<compile_context>
chip_gen: v6e
topology: v6e:2x2x1
jax: 0.10.0
libtpu: 0.0.40
codegen_flags: <defaults>
</compile_context>

<pallas_src>
import functools

import numpy as np
import jax
import jax.numpy as jnp
from jax.experimental import pallas as pl
from jax.experimental.pallas import tpu as pltpu


# ---------------------------------------------------------------------------
# Kernels.  Both operate on lane-dense (TILE_R, LW) tiles; pairs (2k, 2k+1)
# are adjacent lanes and never straddle a row because LW is even.
# ---------------------------------------------------------------------------

def _rope_kernel_resident(x_ref, cos_ref, sin_even_ref, sin_odd_ref, o_ref):
    """Resident-table variant: out = x*cos + roll(x,+1)*sin_e + roll(x,-1)*sin_o.

    sin_even carries -sin on even lanes / 0 on odd; sin_odd carries +sin on odd
    lanes / 0 on even, so the XLU-roll wraparound lanes are multiplied by zero
    and no iota/compare/select is needed.  Arithmetic stays in the input/table
    dtype (bf16-native on v6e/v7x, f32 for f32 inputs).
    """
    x = x_ref[...]
    lw = x.shape[-1]
    x_next = pltpu.roll(x, shift=lw - 1, axis=1)   # lane i <- x[(i+1) % lw]
    x_prev = pltpu.roll(x, shift=1, axis=1)        # lane i <- x[(i-1) % lw]
    o_ref[...] = (x * cos_ref[...]
                  + x_next * sin_even_ref[...]
                  + x_prev * sin_odd_ref[...]).astype(o_ref.dtype)


def _rope_kernel_streamed(x_ref, cos_ref, sin_ref, o_ref):
    """Streamed-table variant (two tables only): sin carries -sin on even lanes
    and +sin on odd lanes; the pair partner is chosen with an even/odd select.
    Used when per-batch position count is too large to keep tables resident.
    """
    x = x_ref[...]
    lw = x.shape[-1]
    x_next = pltpu.roll(x, shift=lw - 1, axis=1)
    x_prev = pltpu.roll(x, shift=1, axis=1)
    lane = jax.lax.broadcasted_iota(jnp.int32, x.shape, dimension=1)
    x_pair = jnp.where((lane & 1) == 0, x_next, x_prev)
    o_ref[...] = (x * cos_ref[...] + x_pair * sin_ref[...]).astype(o_ref.dtype)


# ---------------------------------------------------------------------------
# Host-side rotation tables (numpy, cached) — nothing but pallas_call is on
# the per-call XLA path.
# ---------------------------------------------------------------------------

def _make_tables_np(shape, base):
    """Flat (n_elems,) float32 tables: cos, signed sin, masked even/odd sin."""
    *channel_dims, feature_dim = shape
    n = len(channel_dims)
    assert n >= 1, "shape must have at least one channel dim plus the feature dim"
    assert feature_dim % (2 * n) == 0, (
        f"shape[-1] ({feature_dim}) is not divisible by "
        f"2 * len(shape[:-1]) ({2 * n})")
    k_max = feature_dim // (2 * n)
    theta = 1.0 / (np.float32(base) **
                   (np.arange(k_max, dtype=np.float32) / np.float32(k_max)))
    grids = np.meshgrid(
        *[np.arange(d, dtype=np.float32) for d in channel_dims], indexing="ij")
    angles = np.concatenate([g[..., None] * theta for g in grids], axis=-1)
    cos_flat = np.repeat(np.cos(angles), 2, axis=-1).reshape(-1)
    sin_flat = np.repeat(np.sin(angles), 2, axis=-1).reshape(-1)
    # Flat-index parity equals feature-index parity because F is even.
    even = (np.arange(cos_flat.size) % 2) == 0
    sin_signed = np.where(even, -sin_flat, sin_flat)
    sin_even = np.where(even, -sin_flat, np.float32(0.0))
    sin_odd = np.where(even, np.float32(0.0), sin_flat)
    return (cos_flat.astype(np.float32), sin_signed.astype(np.float32),
            sin_even.astype(np.float32), sin_odd.astype(np.float32))


@functools.lru_cache(maxsize=None)
def _resident_tables(shape, base, lane_width, tile_r, dtype):
    """(tile_r, lane_width) cos / sin_even / sin_odd tables, host-tiled so every
    row tile sees the identical (constant index) table block — fetched once."""
    cos, _, sin_even, sin_odd = _make_tables_np(shape, base)
    num_rows = cos.size // lane_width
    reps = tile_r // num_rows

    def prep(a):
        a2 = np.tile(a.reshape(num_rows, lane_width), (reps, 1))
        return jnp.asarray(a2, dtype=dtype)

    return prep(cos), prep(sin_even), prep(sin_odd)


@functools.lru_cache(maxsize=None)
def _streamed_tables(shape, base, lane_width, dtype):
    cos, sin_signed, _, _ = _make_tables_np(shape, base)
    num_rows = cos.size // lane_width
    return (jnp.asarray(cos.reshape(num_rows, lane_width), dtype=dtype),
            jnp.asarray(sin_signed.reshape(num_rows, lane_width), dtype=dtype))


# ---------------------------------------------------------------------------
# Tiling helpers.
# ---------------------------------------------------------------------------

def _folded_tile(num_rows, batch, target):
    """Row tile for the folded-batch resident-table path.

    Picks tile_r = k * num_rows (k | batch) so the table period aligns with
    every tile, preferring >= 2 grid steps (both v7x TensorCores get work) and
    the largest tile under `target`.  Returns None when per-batch rows already
    exceed the target (stream tables instead).
    """
    if num_rows > target:
        return None
    total = num_rows * batch
    candidates = []
    for k in range(1, batch + 1):
        if batch % k:
            continue
        t = k * num_rows
        if t > target:
            break
        if t % 8 != 0 and t != total:    # (8,128) sublane alignment or full extent
            continue
        candidates.append(t)
    if not candidates:
        # Awkward num_rows with no 8-aligned multiple: a single full-extent
        # block is always legal — only take it while it is tiny.
        return total if total * 128 * 4 <= (4 << 20) else None
    multi_step = [t for t in candidates if total // t >= 2]
    return max(multi_step) if multi_step else max(candidates)


def _choose_row_tile(num_rows, target):
    """Largest multiple of 8 <= target that divides num_rows (else full extent)."""
    if num_rows <= target:
        return num_rows
    t = (target // 8) * 8
    while t >= 8:
        if num_rows % t == 0:
            return t
        t -= 8
    # TODO(synk): pad / masked tail tile for awkward row counts instead of one
    # full-extent block (can exceed the VMEM budget for very large num_rows).
    return num_rows


# ---------------------------------------------------------------------------
# Public wrapper.
# ---------------------------------------------------------------------------

def rope_nd(x, shape, base=10000.0, row_tile=2048):
    """N-dimensional RoPE forward.  x: (B, *shape); matches torch RoPENd."""
    shape = tuple(int(d) for d in shape)
    assert tuple(x.shape[1:]) == shape, (x.shape, shape)
    batch = int(x.shape[0])
    feature_dim = shape[-1]
    n_elems = int(np.prod(shape))                  # positions * F per batch elem
    table_dtype = jnp.bfloat16 if x.dtype == jnp.bfloat16 else jnp.float32
    vmem_bytes = 32 * 1024 * 1024                  # safe on v5e/v6e (128 MiB) & v7x (64 MiB)

    # Lane-dense layout whenever the per-batch extent is a multiple of 128.
    # TODO(synk): for n_elems % 128 != 0, fold batch / pad to 128 lanes instead
    # of dropping to feature_dim-wide (masked) stores.
    lane_width = 128 if n_elems % 128 == 0 else feature_dim
    num_rows = n_elems // lane_width

    if lane_width == 128:
        tile_r = _folded_tile(num_rows, batch, row_tile)
        if tile_r is not None:
            # ---- Path 1: batch folded into rows, tables VMEM-resident. ----
            total_rows = batch * num_rows
            cos, sin_even, sin_odd = _resident_tables(
                shape, float(base), lane_width, int(tile_r), table_dtype)
            x2 = x.reshape(total_rows, lane_width)
            out = pl.pallas_call(
                _rope_kernel_resident,
                out_shape=jax.ShapeDtypeStruct((total_rows, lane_width), x.dtype),
                grid_spec=pltpu.PrefetchScalarGridSpec(
                    num_scalar_prefetch=0,
                    grid=(total_rows // tile_r,),
                    in_specs=[
                        pl.BlockSpec((tile_r, lane_width), lambda r: (r, 0)),  # x
                        pl.BlockSpec((tile_r, lane_width), lambda r: (0, 0)),  # cos
                        pl.BlockSpec((tile_r, lane_width), lambda r: (0, 0)),  # sin_even
                        pl.BlockSpec((tile_r, lane_width), lambda r: (0, 0)),  # sin_odd
                    ],
                    out_specs=pl.BlockSpec((tile_r, lane_width), lambda r: (r, 0)),
                ),
                compiler_params=pltpu.CompilerParams(
                    dimension_semantics=("parallel",),
                    vmem_limit_bytes=vmem_bytes,
                ),
            )(x2, cos, sin_even, sin_odd)
            return out.reshape(x.shape)

    # ---- Path 2: large per-batch extents (or narrow-lane fallback): stream
    # the two tables; batch is the innermost grid axis so the table block
    # index is constant across it and Pallas skips the re-DMA.
    cos, sin_signed = _streamed_tables(shape, float(base), lane_width, table_dtype)
    tile_r = _choose_row_tile(num_rows, row_tile)
    x2 = x.reshape(batch, num_rows, lane_width)
    out = pl.pallas_call(
        _rope_kernel_streamed,
        out_shape=jax.ShapeDtypeStruct((batch, num_rows, lane_width), x.dtype),
        grid_spec=pltpu.PrefetchScalarGridSpec(
            num_scalar_prefetch=0,
            grid=(num_rows // tile_r, batch),
            in_specs=[
                pl.BlockSpec((None, tile_r, lane_width), lambda r, b: (b, r, 0)),  # x
                pl.BlockSpec((tile_r, lane_width), lambda r, b: (r, 0)),           # cos
                pl.BlockSpec((tile_r, lane_width), lambda r, b: (r, 0)),           # signed sin
            ],
            out_specs=pl.BlockSpec((None, tile_r, lane_width), lambda r, b: (b, r, 0)),
        ),
        compiler_params=pltpu.CompilerParams(
            dimension_semantics=("parallel", "parallel"),
            vmem_limit_bytes=vmem_bytes,
        ),
    )(x2, cos, sin_signed)
    return out.reshape(x.shape)


# ---------------------------------------------------------------------------
# Pure-JAX reference (torch complex-multiply semantics) and self-check.
# ---------------------------------------------------------------------------

def rope_ref(x, shape, base=10000.0):
    *channel_dims, F = shape
    n = len(channel_dims)
    k_max = F // (2 * n)
    theta = 1.0 / (base ** (jnp.arange(k_max, dtype=jnp.float32) / k_max))
    grids = jnp.meshgrid(
        *[jnp.arange(d, dtype=jnp.float32) for d in channel_dims], indexing="ij")
    angles = jnp.concatenate([g[..., None] * theta for g in grids], axis=-1)
    rot = jnp.exp(1j * angles.astype(jnp.complex64))
    xr = x.reshape(*x.shape[:-1], F // 2, 2)
    xc = jax.lax.complex(xr[..., 0], xr[..., 1])
    y = rot * xc
    return jnp.stack([jnp.real(y), jnp.imag(y)], axis=-1).reshape(x.shape)


if __name__ == "__main__":
    key = jax.random.PRNGKey(0)
    B, H, W, F = 2, 16, 16, 32            # module shape param = (H, W, F)
    shape = (H, W, F)
    x = jax.random.normal(key, (B, H, W, F), dtype=jnp.float32)

    out = rope_nd(x, shape)
    out = jax.block_until_ready(out)

    ref = rope_ref(x, shape)
    assert out.shape == x.shape and out.dtype == x.dtype
    np.testing.assert_allclose(np.asarray(out), np.asarray(ref),
                               atol=2e-5, rtol=2e-5)
    print("KERNEL_OK")
</pallas_src>

<mosaic_0001>
module attributes {stable_mosaic.version = 11 : i64} {
  func.func @_rope_kernel_resident(%arg0: i32, %arg1: memref<64x128xf32, #tpu.memory_space<vmem>>, %arg2: memref<64x128xf32, #tpu.memory_space<vmem>>, %arg3: memref<64x128xf32, #tpu.memory_space<vmem>>, %arg4: memref<64x128xf32, #tpu.memory_space<vmem>>, %arg5: memref<64x128xf32, #tpu.memory_space<vmem>>) attributes {dimension_semantics = [#tpu.dimension_semantics<parallel>], iteration_bounds = array<i64: 2>, scalar_prefetch = 0 : i64, scratch_operands = 0 : i64, tpu.core_type = #tpu.core_type<tc>, window_params = [{transform_indices = @transform_0, window_bounds = array<i64: 64, 128>}, {pipeline_mode = #tpu.pipeline_mode<synchronous>, transform_indices = @transform_1, window_bounds = array<i64: 64, 128>}, {pipeline_mode = #tpu.pipeline_mode<synchronous>, transform_indices = @transform_2, window_bounds = array<i64: 64, 128>}, {pipeline_mode = #tpu.pipeline_mode<synchronous>, transform_indices = @transform_3, window_bounds = array<i64: 64, 128>}, {transform_indices = @transform_4, window_bounds = array<i64: 64, 128>}]} {
    %c0 = arith.constant 0 : index
    %c0_0 = arith.constant 0 : index
    %0 = vector.load %arg1[%c0, %c0_0] : memref<64x128xf32, #tpu.memory_space<vmem>>, vector<64x128xf32>
    %c127_i32 = arith.constant 127 : i32
    %1 = tpu.dynamic_rotate %0 by %c127_i32 dim 1 : vector<64x128xf32>, i32 -> vector<64x128xf32>
    %c1_i32 = arith.constant 1 : i32
    %2 = tpu.dynamic_rotate %0 by %c1_i32 dim 1 : vector<64x128xf32>, i32 -> vector<64x128xf32>
    %c0_1 = arith.constant 0 : index
    %c0_2 = arith.constant 0 : index
    %3 = vector.load %arg2[%c0_1, %c0_2] : memref<64x128xf32, #tpu.memory_space<vmem>>, vector<64x128xf32>
    %4 = arith.mulf %0, %3 : vector<64x128xf32>
    %c0_3 = arith.constant 0 : index
    %c0_4 = arith.constant 0 : index
    %5 = vector.load %arg3[%c0_3, %c0_4] : memref<64x128xf32, #tpu.memory_space<vmem>>, vector<64x128xf32>
    %6 = arith.mulf %1, %5 : vector<64x128xf32>
    %7 = arith.addf %4, %6 : vector<64x128xf32>
    %c0_5 = arith.constant 0 : index
    %c0_6 = arith.constant 0 : index
    %8 = vector.load %arg4[%c0_5, %c0_6] : memref<64x128xf32, #tpu.memory_space<vmem>>, vector<64x128xf32>
    %9 = arith.mulf %2, %8 : vector<64x128xf32>
    %10 = arith.addf %7, %9 : vector<64x128xf32>
    %c0_7 = arith.constant 0 : index
    %c0_8 = arith.constant 0 : index
    %11 = vector.load %arg5[%c0_7, %c0_8] : memref<64x128xf32, #tpu.memory_space<vmem>>, vector<64x128xf32>
    tpu.vector_store %arg5[%c0_7, %c0_8], %10 {strides = array<i32>} : memref<64x128xf32, #tpu.memory_space<vmem>>, vector<64x128xf32>,
    return
  }
  func.func @transform_0(%arg0: i32) -> (i32, i32) {
    %c0_i32 = arith.constant 0 : i32
    %c0_i32_0 = arith.constant 0 : i32
    return %arg0, %c0_i32 : i32, i32
  }
  func.func @transform_1(%arg0: i32) -> (i32, i32) {
    %c0_i32 = arith.constant 0 : i32
    %c0_i32_0 = arith.constant 0 : i32
    %c0_i32_1 = arith.constant 0 : i32
    return %c0_i32, %c0_i32_0 : i32, i32
  }
  func.func @transform_2(%arg0: i32) -> (i32, i32) {
    %c0_i32 = arith.constant 0 : i32
    %c0_i32_0 = arith.constant 0 : i32
    %c0_i32_1 = arith.constant 0 : i32
    return %c0_i32, %c0_i32_0 : i32, i32
  }
  func.func @transform_3(%arg0: i32) -> (i32, i32) {
    %c0_i32 = arith.constant 0 : i32
    %c0_i32_0 = arith.constant 0 : i32
    %c0_i32_1 = arith.constant 0 : i32
    return %c0_i32, %c0_i32_0 : i32, i32
  }
  func.func @transform_4(%arg0: i32) -> (i32, i32) {
    %c0_i32 = arith.constant 0 : i32
    %c0_i32_0 = arith.constant 0 : i32
    return %arg0, %c0_i32 : i32, i32
  }
}

</mosaic_0001>

<llo_original>
// kernel: tpu_custom_call.1
$region0: #{tpu_custom_call.1}
  #allocation0 [shape = 'u32[]', space=smem, size = 0x4, offset = 0x4, fixed_abs, tag = 'smem constant byte address 0x4 - core index']
  #allocation1 [shape = 'u32[144,128]{1,0:T(1,128)}', space=vmem, size = 0x12000, scoped, tag = 'internal scratch']
  %s0 = inlined_call_operand.hbm [shape: f32[128,128], index: 0, kind: input, shape index: {}]
  %s1 = inlined_call_operand.hbm [shape: f32[64,128], index: 1, kind: input, shape index: {}]
  %s2 = inlined_call_operand.hbm [shape: f32[64,128], index: 2, kind: input, shape index: {}]
  %s3 = inlined_call_operand.hbm [shape: f32[64,128], index: 3, kind: input, shape index: {}]
  %s4 = inlined_call_operand.hbm [shape: f32[128,128], index: 4, kind: output, shape index: {}]
  %s5 = sld [smem:[#allocation0]]
  $region65: #{tpu_custom_call.1} parent=0
    _
  %s7 = ssub.s32 1, %s5
  %s8 = scalar_select 0, %s7, %s5
  $region1: #{tpu_custom_call.1} parent=0
    #allocation2 [shape = 'u8[65536]{0}', space=vmem, size = 0x10000, scoped, tag = 'input window, operand 0']
    #allocation3 [shape = 's32[2]{0}', space=sflag, size = 0x8, scoped, tag = 'scoped memory for tpu_custom_call.1']
    #allocation4 [shape = 's32[2]{0}', space=sflag, size = 0x8, scoped, tag = 'scoped memory for tpu_custom_call.1']
    #allocation5 [shape = 'u8[32768]{0}', space=vmem, size = 0x8000, scoped, tag = 'input window, operand 1, single buffered']
    #allocation6 [shape = 's32[1]{0}', space=sflag, size = 0x4, scoped, tag = 'scoped memory for tpu_custom_call.1']
    #allocation7 [shape = 'u8[32768]{0}', space=vmem, size = 0x8000, scoped, tag = 'input window, operand 2, single buffered']
    #allocation8 [shape = 'u8[32768]{0}', space=vmem, size = 0x8000, scoped, tag = 'input window, operand 3, single buffered']
    #allocation9 [shape = 's32[1]{0}', space=sflag, size = 0x4, scoped, tag = 'scoped memory for tpu_custom_call.1']
    #allocation10 [shape = 'u8[65536]{0}', space=vmem, size = 0x10000, scoped, tag = 'output window, operand 0']
    %9 = vsyncpa [#allocation3], 0
    %s10 = scalar_lea.sflag [#allocation3], 1
    %11 = vsyncpa %s10, 0
    %12 = vsyncpa [#allocation6], 0
    %13 = vsyncpa [#allocation9], 0
    %14 = vsyncpa [#allocation4], 0
    %s15 = scalar_lea.sflag [#allocation4], 1
    %16 = vsyncpa %s15, 0
    loop: start=0, step=1, limit=4
    $region2: #{tpu_custom_call.1} parent=1 // loop_pre_header
      _
    $region3: #{tpu_custom_call.1} parent=1 // loop_header
      %s18 = sphi 0, %s22
      %p19 = scmp.ge.s32.totalorder %s18, 4
      %s28 = sphi 0, %s30
      %s31 = sphi 0, %s28
      %s32 = sphi 0, %s31
      %s48 = sphi 0, %s32
      %s52 = sphi 0, %s52
      %s54 = sphi 0, %s52
      %s55 = sphi 0, %s54
      %s69 = sphi 0, %s55
      %s73 = sphi 0, %s73
      %s75 = sphi 0, %s73
      %s76 = sphi 0, %s75
      %s90 = sphi 0, %s76
      %s94 = sphi 0, %s94
      %s96 = sphi 0, %s94
      %s97 = sphi 0, %s96
      %s111 = sphi 0, %s97
      %s117 = sphi 0, %s119
      %s120 = sphi 0, %s117
      %s121 = sphi 0, %s120
      %s137 = sphi 0, %s121
    $region4: #{tpu_custom_call.1} parent=1 // loop_header_branch
      %21 = sbr.rel (%p19) target = $region8
    $region5: #{tpu_custom_call.1} parent=1 // loop_body
      %s23 = ssub.s32 %s18, 1
      %s24 = ssub.s32 %s18, 2
      %s25 = sadd.s32 %s18, 1
      %s26 = ssub.s32 %s18, %s25
      %p27 = scmp.eq.s32.totalorder %s26, 0
      %s29 = sadd.s32 %s28, 1
      %s30 = scalar_select %p27, %s28, %s29
      %p33 = pneg %p27
      %p34 = scmp.eq.s32.totalorder %s18, 1
      %p35 = por %p33, %p34
      %p36 = scmp.ne.s32.totalorder %s28, %s31
      %p37 = scmp.eq.s32.totalorder %s18, 0
      %p38 = por %p36, %p37
      %p39 = scmp.ne.s32.totalorder %s28, %s31
      %p40 = scmp.eq.s32.totalorder %s23, 1
      %p41 = por %p39, %p40
      %p42 = scmp.ne.s32.totalorder %s31, %s32
      %p43 = scmp.eq.s32.totalorder %s23, 0
      %p44 = por %p42, %p43
      %p45 = scmp.ne.s32.totalorder %s31, %s32
      %p46 = scmp.eq.s32.totalorder %s24, 1
      %p47 = por %p45, %p46
      %p49 = scmp.ne.s32.totalorder %s32, %s48
      %p50 = scmp.eq.s32.totalorder %s24, 0
      %p51 = por %p49, %p50
      %s53 = sadd.s32 %s52, 1
      %p56 = scmp.eq.s32.totalorder %s18, 1
      %p57 = scmp.ne.s32.totalorder %s52, %s54
      %p58 = scmp.eq.s32.totalorder %s18, 0
      %p59 = por %p57, %p58
      %p60 = scmp.ne.s32.totalorder %s52, %s54
      %p61 = scmp.eq.s32.totalorder %s23, 1
      %p62 = por %p60, %p61
      %p63 = scmp.ne.s32.totalorder %s54, %s55
      %p64 = scmp.eq.s32.totalorder %s23, 0
      %p65 = por %p63, %p64
      %p66 = scmp.ne.s32.totalorder %s54, %s55
      %p67 = scmp.eq.s32.totalorder %s24, 1
      %p68 = por %p66, %p67
      %p70 = scmp.ne.s32.totalorder %s55, %s69
      %p71 = scmp.eq.s32.totalorder %s24, 0
      %p72 = por %p70, %p71
      %s74 = sadd.s32 %s73, 1
      %p77 = scmp.eq.s32.totalorder %s18, 1
      %p78 = scmp.ne.s32.totalorder %s73, %s75
      %p79 = scmp.eq.s32.totalorder %s18, 0
      %p80 = por %p78, %p79
      %p81 = scmp.ne.s32.totalorder %s73, %s75
      %p82 = scmp.eq.s32.totalorder %s23, 1
      %p83 = por %p81, %p82
      %p84 = scmp.ne.s32.totalorder %s75, %s76
      %p85 = scmp.eq.s32.totalorder %s23, 0
      %p86 = por %p84, %p85
      %p87 = scmp.ne.s32.totalorder %s75, %s76
      %p88 = scmp.eq.s32.totalorder %s24, 1
      %p89 = por %p87, %p88
      %p91 = scmp.ne.s32.totalorder %s76, %s90
      %p92 = scmp.eq.s32.totalorder %s24, 0
      %p93 = por %p91, %p92
      %s95 = sadd.s32 %s94, 1
      %p98 = scmp.eq.s32.totalorder %s18, 1
      %p99 = scmp.ne.s32.totalorder %s94, %s96
      %p100 = scmp.eq.s32.totalorder %s18, 0
      %p101 = por %p99, %p100
      %p102 = scmp.ne.s32.totalorder %s94, %s96
      %p103 = scmp.eq.s32.totalorder %s23, 1
      %p104 = por %p102, %p103
      %p105 = scmp.ne.s32.totalorder %s96, %s97
      %p106 = scmp.eq.s32.totalorder %s23, 0
      %p107 = por %p105, %p106
      %p108 = scmp.ne.s32.totalorder %s96, %s97
      %p109 = scmp.eq.s32.totalorder %s24, 1
      %p110 = por %p108, %p109
      %p112 = scmp.ne.s32.totalorder %s97, %s111
      %p113 = scmp.eq.s32.totalorder %s24, 0
      %p114 = por %p112, %p113
      %s115 = ssub.s32 %s18, %s25
      %p116 = scmp.eq.s32.totalorder %s115, 0
      %s118 = sadd.s32 %s117, 1
      %s119 = scalar_select %p116, %s117, %s118
      %p122 = pneg %p116
      %p123 = scmp.eq.s32.totalorder %s18, 1
      %p124 = por %p122, %p123
      %p125 = scmp.ne.s32.totalorder %s117, %s120
      %p126 = scmp.eq.s32.totalorder %s18, 0
      %p127 = por %p125, %p126
      %p128 = scmp.ne.s32.totalorder %s117, %s120
      %p129 = scmp.eq.s32.totalorder %s23, 1
      %p130 = por %p128, %p129
      %p131 = scmp.ne.s32.totalorder %s120, %s121
      %p132 = scmp.eq.s32.totalorder %s23, 0
      %p133 = por %p131, %p132
      %p134 = scmp.ne.s32.totalorder %s120, %s121
      %p135 = scmp.eq.s32.totalorder %s24, 1
      %p136 = por %p134, %p135
      %p138 = scmp.ne.s32.totalorder %s121, %s137
      %p139 = scmp.eq.s32.totalorder %s24, 0
      %p140 = por %p138, %p139
      %p141 = scmp.le.s32.totalorder 1, %s18
      %p142 = scmp.lt.s32.totalorder %s18, 3
      %p143 = pnand %p141, %p142
      %p144 = pneg %p143
      // Predicated region
      $region9: #{tpu_custom_call.1} parent=5 // pred_check
        _
      $region10: #{tpu_custom_call.1} parent=5 // pred_check_branch
        %146 = sbr.rel (%p143) target = $region12
      $region11: #{tpu_custom_call.1} parent=5 // pred_region
        %s147 = ssub.s32 %s18, 1
        // Predicated region
        $region13: #{tpu_custom_call.1} parent=11 // pred_check
          %p148 = pneg %p65
        $region14: #{tpu_custom_call.1} parent=11 // pred_check_branch
          %150 = sbr.rel (%p148) target = $region16
        $region15: #{tpu_custom_call.1} parent=11 // pred_region
          %s152 = ssub.s32 1024, 1024
          %153 = vsyncadd [#allocation6], %s152
          %s154 = sshll.u32 [#allocation5], 4
          %s155 = int_to_ptr.vmem [resolvable:$true] %s154
          %160 = dma.hbm_to_vmem [thread:$0]  %s1, 1024, %s155, [#allocation6], 128, 128, 8
        $region16: #{tpu_custom_call.1} parent=11 // pred_fallthru
          _
        // Predicated region
        $region17: #{tpu_custom_call.1} parent=11 // pred_check
          %p161 = pneg %p86
        $region18: #{tpu_custom_call.1} parent=11 // pred_check_branch
          %163 = sbr.rel (%p161) target = $region20
        $region19: #{tpu_custom_call.1} parent=11 // pred_region
          %s165 = ssub.s32 1024, 1024
          %166 = vsyncadd [#allocation6], %s165
          %s167 = sshll.u32 [#allocation7], 4
          %s168 = int_to_ptr.vmem [resolvable:$true] %s167
          %173 = dma.hbm_to_vmem [thread:$0]  %s2, 1024, %s168, [#allocation6], 128, 128, 8
        $region20: #{tpu_custom_call.1} parent=11 // pred_fallthru
          _
        // Predicated region
        $region21: #{tpu_custom_call.1} parent=11 // pred_check
          %p174 = pneg %p107
        $region22: #{tpu_custom_call.1} parent=11 // pred_check_branch
          %176 = sbr.rel (%p174) target = $region24
        $region23: #{tpu_custom_call.1} parent=11 // pred_region
          %s178 = ssub.s32 1024, 1024
          %179 = vsyncadd [#allocation9], %s178
          %s180 = sshll.u32 [#allocation8], 4
          %s181 = int_to_ptr.vmem [resolvable:$true] %s180
          %186 = dma.hbm_to_vmem [thread:$0]  %s3, 1024, %s181, [#allocation9], 128, 128, 8
        $region24: #{tpu_custom_call.1} parent=11 // pred_fallthru
          _
      $region12: #{tpu_custom_call.1} parent=5 // pred_fallthru
        _
      %p187 = scmp.lt.s32.totalorder %s18, 2
      // Predicated region
      $region25: #{tpu_custom_call.1} parent=5 // pred_check
        %p188 = pneg %p187
      $region26: #{tpu_custom_call.1} parent=5 // pred_check_branch
        %190 = sbr.rel (%p188) target = $region28
      $region27: #{tpu_custom_call.1} parent=5 // pred_region
        // Predicated region
        $region29: #{tpu_custom_call.1} parent=27 // pred_check
          %p191 = pneg %p38
        $region30: #{tpu_custom_call.1} parent=27 // pred_check_branch
          %193 = sbr.rel (%p191) target = $region32
        $region31: #{tpu_custom_call.1} parent=27 // pred_region
          %s194 = sand.u32 %s28, 1
          %s195 = scalar_lea.sflag [#allocation3], %s194
          %s196 = sand.u32 %s28, 1
          %s197 = smul.addr %s196, 64
          %s198 = scalar_lea.vmem [#allocation2], %s197
          %s199 = smul.u32 8, %s18
          %s201 = ssub.s32 1024, 1024
          %202 = vsyncadd %s195, %s201
          %s203 = smul.addr %s199, 128
          %s204 = scalar_lea.hbm %s0, %s203
          %s205 = sshll.u32 %s198, 4
          %s206 = int_to_ptr.vmem [resolvable:$true] %s205
          %211 = dma.hbm_to_vmem [thread:$0]  %s204, 1024, %s206, %s195, 128, 128, 8
        $region32: #{tpu_custom_call.1} parent=27 // pred_fallthru
          _
      $region28: #{tpu_custom_call.1} parent=5 // pred_fallthru
        _
      %p212 = scmp.le.s32.totalorder 1, %s18
      %p213 = scmp.lt.s32.totalorder %s18, 3
      %p214 = pnand %p212, %p213
      %p215 = pneg %p214
      // Predicated region
      $region33: #{tpu_custom_call.1} parent=5 // pred_check
        _
      $region34: #{tpu_custom_call.1} parent=5 // pred_check_branch
        %217 = sbr.rel (%p214) target = $region36
      $region35: #{tpu_custom_call.1} parent=5 // pred_region
        %s218 = ssub.s32 %s18, 1
        %s219 = sand.u32 %s31, 1
        %s220 = scalar_lea.sflag [#allocation3], %s219
        %s221 = sand.u32 %s31, 1
        %s222 = smul.addr %s221, 64
        %s223 = scalar_lea.vmem [#allocation2], %s222
        // Predicated region
        $region37: #{tpu_custom_call.1} parent=35 // pred_check
          %p224 = pneg %p44
        $region38: #{tpu_custom_call.1} parent=35 // pred_check_branch
          %226 = sbr.rel (%p224) target = $region40
        $region39: #{tpu_custom_call.1} parent=35 // pred_region
          %227 = dma.done %s220, 1024
        $region40: #{tpu_custom_call.1} parent=35 // pred_fallthru
          _
        // Predicated region
        $region41: #{tpu_custom_call.1} parent=35 // pred_check
          %p228 = pneg %p65
        $region42: #{tpu_custom_call.1} parent=35 // pred_check_branch
          %230 = sbr.rel (%p228) target = $region44
        $region43: #{tpu_custom_call.1} parent=35 // pred_region
          %231 = dma.done [#allocation6], 1024
        $region44: #{tpu_custom_call.1} parent=35 // pred_fallthru
          _
        // Predicated region
        $region45: #{tpu_custom_call.1} parent=35 // pred_check
          %p232 = pneg %p86
        $region46: #{tpu_custom_call.1} parent=35 // pred_check_branch
          %234 = sbr.rel (%p232) target = $region48
        $region47: #{tpu_custom_call.1} parent=35 // pred_region
          %235 = dma.done [#allocation6], 1024
        $region48: #{tpu_custom_call.1} parent=35 // pred_fallthru
          _
        // Predicated region
        $region49: #{tpu_custom_call.1} parent=35 // pred_check
          %p236 = pneg %p107
        $region50: #{tpu_custom_call.1} parent=35 // pred_check_branch
          %238 = sbr.rel (%p236) target = $region52
        $region51: #{tpu_custom_call.1} parent=35 // pred_region
          %239 = dma.done [#allocation9], 1024
        $region52: #{tpu_custom_call.1} parent=35 // pred_fallthru
          _
        %s240 = sand.u32 %s31, 1
        %s241 = scalar_lea.sflag [#allocation3], %s240
        %s242 = sand.u32 %s31, 1
        %s243 = smul.addr %s242, 64
        %s244 = scalar_lea.vmem [#allocation2], %s243
        %p245 = pneg %p44
        %p246 = pneg %p41
        %p247 = pneg %p65
        %p248 = pneg %p62
        %p249 = pneg %p86
        %p250 = pneg %p83
        %p251 = pneg %p107
        %p252 = pneg %p104
        %p253 = pneg %p133
        %p254 = pneg %p130
        %s255 = sand.u32 %s120, 1
        %s256 = scalar_lea.sflag [#allocation4], %s255
        %s257 = sand.u32 %s120, 1
        %s258 = smul.addr %s257, 64
        %s259 = scalar_lea.vmem [#allocation10], %s258
        %s260 = smul.u32 8, %s23
        %s261 = smul.u32 8, %s23
        %v262 = vld [vmem:[%s223] sm:$0xff]
        %v263 = vld [vmem:[%s223 + $0x8] sm:$0xff]
        %v264 = vld [vmem:[%s223 + $0x10] sm:$0xff]
        %v265 = vld [vmem:[%s223 + $0x18] sm:$0xff]
        %v266 = vld [vmem:[%s223 + $0x20] sm:$0xff]
        %v267 = vld [vmem:[%s223 + $0x28] sm:$0xff]
        %v268 = vld [vmem:[%s223 + $0x30] sm:$0xff]
        %v269 = vld [vmem:[%s223 + $0x38] sm:$0xff]
        %270 = vrot.lane.b32.xlu0 %v262, 127
        %v271 = vpop.permute.xlu0 %270
        %272 = vrot.lane.b32.xlu0 %v263, 127
        %v273 = vpop.permute.xlu0 %272
        %274 = vrot.lane.b32.xlu0 %v264, 127
        %v275 = vpop.permute.xlu0 %274
        %276 = vrot.lane.b32.xlu0 %v265, 127
        %v277 = vpop.permute.xlu0 %276
        %278 = vrot.lane.b32.xlu0 %v266, 127
        %v279 = vpop.permute.xlu0 %278
        %280 = vrot.lane.b32.xlu0 %v267, 127
        %v281 = vpop.permute.xlu0 %280
        %282 = vrot.lane.b32.xlu0 %v268, 127
        %v283 = vpop.permute.xlu0 %282
        %284 = vrot.lane.b32.xlu0 %v269, 127
        %v285 = vpop.permute.xlu0 %284
        %286 = vrot.lane.b32.xlu0 %v262, 1
        %v287 = vpop.permute.xlu0 %286
        %288 = vrot.lane.b32.xlu0 %v263, 1
        %v289 = vpop.permute.xlu0 %288
        %290 = vrot.lane.b32.xlu0 %v264, 1
        %v291 = vpop.permute.xlu0 %290
        %292 = vrot.lane.b32.xlu0 %v265, 1
        %v293 = vpop.permute.xlu0 %292
        %294 = vrot.lane.b32.xlu0 %v266, 1
        %v295 = vpop.permute.xlu0 %294
        %296 = vrot.lane.b32.xlu0 %v267, 1
        %v297 = vpop.permute.xlu0 %296
        %298 = vrot.lane.b32.xlu0 %v268, 1
        %v299 = vpop.permute.xlu0 %298
        %300 = vrot.lane.b32.xlu0 %v269, 1
        %v301 = vpop.permute.xlu0 %300
        %v302 = vld [vmem:[#allocation5] sm:$0xff]
        %v303 = vld [vmem:[#allocation5 + $0x8] sm:$0xff]
        %v304 = vld [vmem:[#allocation5 + $0x10] sm:$0xff]
        %v305 = vld [vmem:[#allocation5 + $0x18] sm:$0xff]
        %v306 = vld [vmem:[#allocation5 + $0x20] sm:$0xff]
        %v307 = vld [vmem:[#allocation5 + $0x28] sm:$0xff]
        %v308 = vld [vmem:[#allocation5 + $0x30] sm:$0xff]
        %v309 = vld [vmem:[#allocation5 + $0x38] sm:$0xff]
        %v310 = vmul.f32 %v262, %v302
        %v311 = vmul.f32 %v263, %v303
        %v312 = vmul.f32 %v264, %v304
        %v313 = vmul.f32 %v265, %v305
        %v314 = vmul.f32 %v266, %v306
        %v315 = vmul.f32 %v267, %v307
        %v316 = vmul.f32 %v268, %v308
        %v317 = vmul.f32 %v269, %v309
        %v318 = vld [vmem:[#allocation7] sm:$0xff]
        %v319 = vld [vmem:[#allocation7 + $0x8] sm:$0xff]
        %v320 = vld [vmem:[#allocation7 + $0x10] sm:$0xff]
        %v321 = vld [vmem:[#allocation7 + $0x18] sm:$0xff]
        %v322 = vld [vmem:[#allocation7 + $0x20] sm:$0xff]
        %v323 = vld [vmem:[#allocation7 + $0x28] sm:$0xff]
        %v324 = vld [vmem:[#allocation7 + $0x30] sm:$0xff]
        %v325 = vld [vmem:[#allocation7 + $0x38] sm:$0xff]
        %v326 = vmul.f32 %v271, %v318
        %v327 = vmul.f32 %v273, %v319
        %v328 = vmul.f32 %v275, %v320
        %v329 = vmul.f32 %v277, %v321
        %v330 = vmul.f32 %v279, %v322
        %v331 = vmul.f32 %v281, %v323
        %v332 = vmul.f32 %v283, %v324
        %v333 = vmul.f32 %v285, %v325
        %v334 = vadd.f32 %v310, %v326
        %v335 = vadd.f32 %v311, %v327
        %v336 = vadd.f32 %v312, %v328
        %v337 = vadd.f32 %v313, %v329
        %v338 = vadd.f32 %v314, %v330
        %v339 = vadd.f32 %v315, %v331
        %v340 = vadd.f32 %v316, %v332
        %v341 = vadd.f32 %v317, %v333
        %v342 = vld [vmem:[#allocation8] sm:$0xff]
        %v343 = vld [vmem:[#allocation8 + $0x8] sm:$0xff]
        %v344 = vld [vmem:[#allocation8 + $0x10] sm:$0xff]
        %v345 = vld [vmem:[#allocation8 + $0x18] sm:$0xff]
        %v346 = vld [vmem:[#allocation8 + $0x20] sm:$0xff]
        %v347 = vld [vmem:[#allocation8 + $0x28] sm:$0xff]
        %v348 = vld [vmem:[#allocation8 + $0x30] sm:$0xff]
        %v349 = vld [vmem:[#allocation8 + $0x38] sm:$0xff]
        %v350 = vmul.f32 %v287, %v342
        %v351 = vmul.f32 %v289, %v343
        %v352 = vmul.f32 %v291, %v344
        %v353 = vmul.f32 %v293, %v345
        %v354 = vmul.f32 %v295, %v346
        %v355 = vmul.f32 %v297, %v347
        %v356 = vmul.f32 %v299, %v348
        %v357 = vmul.f32 %v301, %v349
        %v358 = vadd.f32 %v334, %v350
        %v359 = vadd.f32 %v335, %v351
        %v360 = vadd.f32 %v336, %v352
        %v361 = vadd.f32 %v337, %v353
        %v362 = vadd.f32 %v338, %v354
        %v363 = vadd.f32 %v339, %v355
        %v364 = vadd.f32 %v340, %v356
        %v365 = vadd.f32 %v341, %v357
        %366 = vst [vmem:[%s259] sm:$0xff] %v358
        %367 = vst [vmem:[%s259 + $0x8] sm:$0xff] %v359
        %368 = vst [vmem:[%s259 + $0x10] sm:$0xff] %v360
        %369 = vst [vmem:[%s259 + $0x18] sm:$0xff] %v361
        %370 = vst [vmem:[%s259 + $0x20] sm:$0xff] %v362
        %371 = vst [vmem:[%s259 + $0x28] sm:$0xff] %v363
        %372 = vst [vmem:[%s259 + $0x30] sm:$0xff] %v364
        %373 = vst [vmem:[%s259 + $0x38] sm:$0xff] %v365
        %s374 = sand.u32 %s120, 1
        %s375 = scalar_lea.sflag [#allocation4], %s374
        %s376 = sand.u32 %s120, 1
        %s377 = smul.addr %s376, 64
        %s378 = scalar_lea.vmem [#allocation10], %s377
        // Predicated region
        $region53: #{tpu_custom_call.1} parent=35 // pred_check
          %p379 = pneg %p130
        $region54: #{tpu_custom_call.1} parent=35 // pred_check_branch
          %381 = sbr.rel (%p379) target = $region56
        $region55: #{tpu_custom_call.1} parent=35 // pred_region
          %s382 = smul.u32 8, %s23
          %s384 = ssub.s32 1024, 1024
          %385 = vsyncadd %s375, %s384
          %s386 = smul.addr %s382, 128
          %s387 = scalar_lea.hbm %s4, %s386
          %s388 = sshll.u32 %s378, 4
          %s389 = int_to_ptr.vmem [resolvable:$true] %s388
          %394 = dma.vmem_to_hbm [thread:$0]  %s389, 1024, %s387, %s375, 128, 128, 8
        $region56: #{tpu_custom_call.1} parent=35 // pred_fallthru
          _
      $region36: #{tpu_custom_call.1} parent=5 // pred_fallthru
        _
      %p395 = scmp.le.s32.totalorder 2, %s18
      // Predicated region
      $region57: #{tpu_custom_call.1} parent=5 // pred_check
        %p396 = pneg %p395
      $region58: #{tpu_custom_call.1} parent=5 // pred_check_branch
        %398 = sbr.rel (%p396) target = $region60
      $region59: #{tpu_custom_call.1} parent=5 // pred_region
        %s399 = ssub.s32 %s18, 2
        // Predicated region
        $region61: #{tpu_custom_call.1} parent=59 // pred_check
          %p400 = pneg %p136
        $region62: #{tpu_custom_call.1} parent=59 // pred_check_branch
          %402 = sbr.rel (%p400) target = $region64
        $region63: #{tpu_custom_call.1} parent=59 // pred_region
          %s403 = sand.u32 %s121, 1
          %s404 = scalar_lea.sflag [#allocation4], %s403
          %s405 = sand.u32 %s121, 1
          %s406 = smul.addr %s405, 64
          %s407 = scalar_lea.vmem [#allocation10], %s406
          %408 = dma.done %s404, 1024
        $region64: #{tpu_custom_call.1} parent=59 // pred_fallthru
          _
      $region60: #{tpu_custom_call.1} parent=5 // pred_fallthru
        _
    $region6: #{tpu_custom_call.1} parent=1 // loop_footer
      %s22 = sadd.s32 1, %s18
    $region7: #{tpu_custom_call.1} parent=1 // loop_footer_branch
      %17 = sbr.rel target = $region3
    $region8: #{tpu_custom_call.1} parent=1 // loop_exit
      _
    %409 = vsyncpa [#allocation3], 1
    %s410 = scalar_lea.sflag [#allocation3], 1
    %411 = vsyncpa %s410, 1
    %412 = vsyncpa [#allocation6], 1
    %413 = vsyncpa [#allocation9], 1
    %414 = vsyncpa [#allocation4], 1
    %s415 = scalar_lea.sflag [#allocation4], 1
    %416 = vsyncpa %s415, 1

</llo_original>
